<compile_context>
chip_gen: v6e
topology: v6e:2x2x1
jax: 0.10.0
libtpu: 0.0.40
codegen_flags: <defaults>
</compile_context>

<pallas_src>
import jax
import jax.numpy as jnp
from jax.experimental import pallas as pl
from jax.experimental.pallas import tpu as pltpu


def _round_up(x, m):
    return (x + m - 1) // m * m


def _gated_attn_kernel(x_ref, wab_ref, bab_ref, wc_ref, bc_ref, out_ref):
    """One row tile of the gated attention forward pass.

    x_ref  : (TN, L)      input rows (compute dtype: f32 or bf16)
    wab_ref: (L, 2*Dp)    fused [Wa | Wb] weight (compute dtype)
    bab_ref: (1, 2*Dp)    fused [ba | bb] bias (f32)
    wc_ref : (C, Dp)      attention_c weight, (out_features, in_features) layout (f32)
    bc_ref : (C, 1)       attention_c bias (f32)
    out_ref: (C, TN)      lane-dense attention logits (transposed)
    """
    dp = wc_ref.shape[1]

    # Single fused MXU matmul for both projections; f32 accumulation.
    h = jnp.dot(x_ref[...], wab_ref[...],
                preferred_element_type=jnp.float32) + bab_ref[...]

    # Activations and gating stay in f32.  The split at column dp is
    # 128-lane aligned by construction (Dp is a multiple of 128).
    a = jnp.tanh(h[:, :dp])
    b = jax.nn.sigmoid(h[:, dp:])
    g = a * b                                              # (TN, Dp) f32

    # attention_c as an NT matmul: (C, Dp) contracted with (TN, Dp) on the
    # last dims -> (C, TN).  Lane-dense result along TN, no transpose needed.
    A_t = jax.lax.dot_general(
        wc_ref[...], g,
        dimension_numbers=(((1,), (1,)), ((), ())),
        preferred_element_type=jnp.float32) + bc_ref[...]

    out_ref[...] = A_t.astype(out_ref.dtype)


def attn_net_gated_forward(x, wa, ba, wb, bb, wc, bc, *,
                           max_tile_n=512, compute_dtype=None,
                           interpret=False):
    """Pallas forward pass.  Returns (A, x), matching the PyTorch module.

    x : (N, L)
    wa, wb : (L, D)  (pre-transposed vs. nn.Linear),  ba, bb : (D,)
    wc : (D, C),  bc : (C,)
    """
    N, L = x.shape
    D = wa.shape[1]
    C = wc.shape[1]
    out_dtype = x.dtype
    if compute_dtype is None:
        compute_dtype = x.dtype
    f32 = jnp.float32

    # ---- Fuse and pad the hidden dimension to a multiple of 128 lanes.
    Dp = _round_up(D, 128)
    wa_p = jnp.pad(wa.astype(compute_dtype), ((0, 0), (0, Dp - D)))
    wb_p = jnp.pad(wb.astype(compute_dtype), ((0, 0), (0, Dp - D)))
    wab = jnp.concatenate([wa_p, wb_p], axis=1)                     # (L, 2*Dp)
    bab = jnp.concatenate(
        [jnp.pad(ba.astype(f32), (0, Dp - D)),
         jnp.pad(bb.astype(f32), (0, Dp - D))]).reshape(1, 2 * Dp)  # (1, 2*Dp)
    wc_t = jnp.pad(wc.astype(f32), ((0, Dp - D), (0, 0))).T         # (C, Dp)
    bc2 = bc.astype(f32).reshape(C, 1)                              # (C, 1)

    # ---- Row tiling: small N -> one grid step; large N -> 128-aligned tiles
    #      (the lane dim of the transposed output block must be 128-aligned
    #       whenever it is not the full array extent).
    n8 = _round_up(N, 8)
    if n8 <= max_tile_n:
        tile_n, n_pad = n8, n8
    else:
        tile_n = _round_up(min(max_tile_n, n8), 128)
        n_pad = _round_up(n8, tile_n)

    x_c = x.astype(compute_dtype)
    if n_pad != N:
        x_c = jnp.pad(x_c, ((0, n_pad - N), (0, 0)))

    grid = (n_pad // tile_n,)

    a_t = pl.pallas_call(
        _gated_attn_kernel,
        out_shape=jax.ShapeDtypeStruct((C, n_pad), out_dtype),
        grid_spec=pltpu.PrefetchScalarGridSpec(
            num_scalar_prefetch=0,
            grid=grid,
            in_specs=[
                pl.BlockSpec((tile_n, L), lambda i: (i, 0)),    # x row tile
                pl.BlockSpec((L, 2 * Dp), lambda i: (0, 0)),    # [Wa|Wb]
                pl.BlockSpec((1, 2 * Dp), lambda i: (0, 0)),    # [ba|bb]
                pl.BlockSpec((C, Dp), lambda i: (0, 0)),        # Wc (out,in)
                pl.BlockSpec((C, 1), lambda i: (0, 0)),         # bc
            ],
            out_specs=pl.BlockSpec((C, tile_n), lambda i: (0, i)),
        ),
        compiler_params=pltpu.CompilerParams(
            dimension_semantics=("parallel",),   # megacore-shard row tiles
            vmem_limit_bytes=32 * 1024 * 1024,   # safe on v5e/v6e/v7x
        ),
        interpret=interpret,
    )(x_c, wab, bab, wc_t, bc2)

    # Back to the module's (N, C) layout; for C == 1 this is just a reshape.
    A = a_t[:, :N].T
    return A, x


def _init_params(key, L, D, C, dtype=jnp.float32):
    """Deterministic synthetic parameters (nn.Linear-shaped, pre-transposed)."""
    k = jax.random.split(key, 6)
    scale = 0.1
    wa = (scale * jax.random.normal(k[0], (L, D))).astype(dtype)
    ba = (scale * jax.random.normal(k[1], (D,))).astype(dtype)
    wb = (scale * jax.random.normal(k[2], (L, D))).astype(dtype)
    bb = (scale * jax.random.normal(k[3], (D,))).astype(dtype)
    wc = (scale * jax.random.normal(k[4], (D, C))).astype(dtype)
    bc = (scale * jax.random.normal(k[5], (C,))).astype(dtype)
    return wa, ba, wb, bb, wc, bc


def _reference_forward(x, wa, ba, wb, bb, wc, bc):
    a = jnp.tanh(x @ wa + ba)
    b = jax.nn.sigmoid(x @ wb + bb)
    return (a * b) @ wc + bc


# TODO(synk): the optional nn.Dropout(p=0.25) branch (dropout=True) is not
# implemented; this kernel covers the default inference path (dropout=False).

if __name__ == "__main__":
    key = jax.random.PRNGKey(0)
    kx, kp, kx2 = jax.random.split(key, 3)

    # Small shapes consistent with the module (production default L=1024, D=256, C=1).
    N, L, D, C = 37, 96, 48, 1          # N deliberately NOT a multiple of 8
    x = jax.random.normal(kx, (N, L), dtype=jnp.float32)
    params = _init_params(kp, L, D, C)
    A_ref = _reference_forward(x, *params)

    # 1) f32, single-tile path (row padding exercised).
    A, x_out = attn_net_gated_forward(x, *params)
    A = jax.block_until_ready(A)
    x_out = jax.block_until_ready(x_out)
    assert A.shape == (N, C) and x_out.shape == (N, L)
    assert jnp.allclose(A, A_ref, atol=2e-3, rtol=2e-3)
    assert jnp.allclose(x_out, x)

    # 2) f32, multi-tile path (grid > 1, ragged tail padded).
    N2 = 1500
    x2 = jax.random.normal(kx2, (N2, L), dtype=jnp.float32)
    A2, _ = attn_net_gated_forward(x2, *params, max_tile_n=512)
    A2 = jax.block_until_ready(A2)
    assert A2.shape == (N2, C)
    assert jnp.allclose(A2, _reference_forward(x2, *params), atol=2e-3, rtol=2e-3)

    # 3) bf16 streaming of x / fused weights, f32 accumulation + activations.
    A3, _ = attn_net_gated_forward(x, *params, compute_dtype=jnp.bfloat16)
    A3 = jax.block_until_ready(A3)
    assert jnp.allclose(A3, A_ref, atol=3e-2, rtol=3e-2)

    print("KERNEL_OK")
</pallas_src>

<mosaic_0001>
module attributes {stable_mosaic.version = 11 : i64} {
  func.func @_gated_attn_kernel(%arg0: i32, %arg1: memref<40x96xf32, #tpu.memory_space<vmem>>, %arg2: memref<96x256xf32, #tpu.memory_space<vmem>>, %arg3: memref<1x256xf32, #tpu.memory_space<vmem>>, %arg4: memref<1x128xf32, #tpu.memory_space<vmem>>, %arg5: memref<1x1xf32, #tpu.memory_space<vmem>>, %arg6: memref<1x40xf32, #tpu.memory_space<vmem>>) attributes {dimension_semantics = [#tpu.dimension_semantics<parallel>], iteration_bounds = array<i64: 1>, scalar_prefetch = 0 : i64, scratch_operands = 0 : i64, tpu.core_type = #tpu.core_type<tc>, window_params = [{transform_indices = @transform_0, window_bounds = array<i64: 40, 96>}, {pipeline_mode = #tpu.pipeline_mode<synchronous>, transform_indices = @transform_1, window_bounds = array<i64: 96, 256>}, {pipeline_mode = #tpu.pipeline_mode<synchronous>, transform_indices = @transform_2, window_bounds = array<i64: 1, 256>}, {pipeline_mode = #tpu.pipeline_mode<synchronous>, transform_indices = @transform_3, window_bounds = array<i64: 1, 128>}, {pipeline_mode = #tpu.pipeline_mode<synchronous>, transform_indices = @transform_4, window_bounds = array<i64: 1, 1>}, {transform_indices = @transform_5, window_bounds = array<i64: 1, 40>}]} {
    %c0 = arith.constant 0 : index
    %c0_0 = arith.constant 0 : index
    %0 = vector.load %arg1[%c0, %c0_0] : memref<40x96xf32, #tpu.memory_space<vmem>>, vector<40x96xf32>
    %c0_1 = arith.constant 0 : index
    %c0_2 = arith.constant 0 : index
    %1 = vector.load %arg2[%c0_1, %c0_2] : memref<96x256xf32, #tpu.memory_space<vmem>>, vector<96x256xf32>
    %cst = arith.constant dense<0.000000e+00> : vector<40x256xf32>
    %2 = tpu.matmul %0, %1, %cst {dimension_numbers = #tpu.dot_dimension_numbers<[1], [0], [0], [1], [0, 0, 1, 1], [], []>} : vector<40x96xf32>, vector<96x256xf32>, vector<40x256xf32> -> vector<40x256xf32>
    %c0_3 = arith.constant 0 : index
    %c0_4 = arith.constant 0 : index
    %3 = vector.load %arg3[%c0_3, %c0_4] : memref<1x256xf32, #tpu.memory_space<vmem>>, vector<1x256xf32>
    %4 = vector.broadcast %3 : vector<1x256xf32> to vector<40x256xf32>
    %5 = arith.addf %2, %4 : vector<40x256xf32>
    %6 = vector.extract_strided_slice %5 {offsets = [0, 0], sizes = [40, 128], strides = [1, 1]} : vector<40x256xf32> to vector<40x128xf32>
    %7 = math.tanh %6 : vector<40x128xf32>
    %8 = vector.extract_strided_slice %5 {offsets = [0, 128], sizes = [40, 128], strides = [1, 1]} : vector<40x256xf32> to vector<40x128xf32>
    %9 = arith.negf %8 : vector<40x128xf32>
    %10 = math.exp %9 : vector<40x128xf32>
    %cst_5 = arith.constant 1.000000e+00 : f32
    %11 = vector.broadcast %cst_5 : f32 to vector<40x128xf32>
    %12 = arith.addf %11, %10 : vector<40x128xf32>
    %13 = arith.divf %11, %12 : vector<40x128xf32>
    %14 = arith.mulf %7, %13 : vector<40x128xf32>
    %c0_6 = arith.constant 0 : index
    %c0_7 = arith.constant 0 : index
    %15 = vector.load %arg4[%c0_6, %c0_7] : memref<1x128xf32, #tpu.memory_space<vmem>>, vector<1x128xf32>
    %cst_8 = arith.constant dense<0.000000e+00> : vector<1x40xf32>
    %16 = tpu.matmul %15, %14, %cst_8 {dimension_numbers = #tpu.dot_dimension_numbers<[1], [1], [0], [0], [0, 0, 1, 0], [], []>} : vector<1x128xf32>, vector<40x128xf32>, vector<1x40xf32> -> vector<1x40xf32>
    %c0_9 = arith.constant 0 : index
    %c0_10 = arith.constant 0 : index
    %17 = vector.load %arg5[%c0_9, %c0_10] : memref<1x1xf32, #tpu.memory_space<vmem>>, vector<1x1xf32>
    %18 = vector.broadcast %17 : vector<1x1xf32> to vector<1x40xf32>
    %19 = arith.addf %16, %18 : vector<1x40xf32>
    %c0_11 = arith.constant 0 : index
    %c0_12 = arith.constant 0 : index
    %20 = vector.load %arg6[%c0_11, %c0_12] : memref<1x40xf32, #tpu.memory_space<vmem>>, vector<1x40xf32>
    tpu.vector_store %arg6[%c0_11, %c0_12], %19 {strides = array<i32>} : memref<1x40xf32, #tpu.memory_space<vmem>>, vector<1x40xf32>,
    return
  }
  func.func @transform_0(%arg0: i32) -> (i32, i32) {
    %c0_i32 = arith.constant 0 : i32
    %c0_i32_0 = arith.constant 0 : i32
    return %arg0, %c0_i32 : i32, i32
  }
  func.func @transform_1(%arg0: i32) -> (i32, i32) {
    %c0_i32 = arith.constant 0 : i32
    %c0_i32_0 = arith.constant 0 : i32
    %c0_i32_1 = arith.constant 0 : i32
    return %c0_i32, %c0_i32_0 : i32, i32
  }
  func.func @transform_2(%arg0: i32) -> (i32, i32) {
    %c0_i32 = arith.constant 0 : i32
    %c0_i32_0 = arith.constant 0 : i32
    %c0_i32_1 = arith.constant 0 : i32
    return %c0_i32, %c0_i32_0 : i32, i32
  }
  func.func @transform_3(%arg0: i32) -> (i32, i32) {
    %c0_i32 = arith.constant 0 : i32
    %c0_i32_0 = arith.constant 0 : i32
    %c0_i32_1 = arith.constant 0 : i32
    return %c0_i32, %c0_i32_0 : i32, i32
  }
  func.func @transform_4(%arg0: i32) -> (i32, i32) {
    %c0_i32 = arith.constant 0 : i32
    %c0_i32_0 = arith.constant 0 : i32
    %c0_i32_1 = arith.constant 0 : i32
    return %c0_i32, %c0_i32_0 : i32, i32
  }
  func.func @transform_5(%arg0: i32) -> (i32, i32) {
    %c0_i32 = arith.constant 0 : i32
    %c0_i32_0 = arith.constant 0 : i32
    return %c0_i32, %arg0 : i32, i32
  }
}

</mosaic_0001>

<llo_original>
// kernel: tpu_custom_call.1
$region0: #{tpu_custom_call.1}
  #allocation0 [shape = 'u32[]', space=smem, size = 0x4, offset = 0x4, fixed_abs, tag = 'smem constant byte address 0x4 - core index']
  #allocation1 [shape = 'u32[144,128]{1,0:T(1,128)}', space=vmem, size = 0x12000, scoped, tag = 'internal scratch']
  #allocation2 [shape = 'f32[1,1]{1,0:T(1,128)S(1)}', space=vmem, size = 0x200, scoped, tag = 'scoped memory for tpu_custom_call.1']
  %s0 = inlined_call_operand.hbm [shape: f32[40,96], index: 0, kind: input, shape index: {}]
  %s1 = inlined_call_operand.hbm [shape: f32[96,256], index: 1, kind: input, shape index: {}]
  %s2 = inlined_call_operand.vmem [shape: f32[1,256], index: 2, kind: input, shape index: {}]
  %s3 = inlined_call_operand.vmem [shape: f32[1,128], index: 3, kind: input, shape index: {}]
  %s4 = inlined_call_operand.<no memory space> [shape: f32[1,1], index: 4, kind: input, shape index: {}]
  %s5 = inlined_call_operand.hbm [shape: f32[1,40], index: 5, kind: output, shape index: {}]
  %s6 = sld [smem:[#allocation0]]
  $region38: #{tpu_custom_call.1} parent=0
    _
  %s8 = ssub.s32 1, %s6
  %s9 = scalar_select 0, %s8, %s6
  %v10 = vstv %s4
  %11 = vst [vmem:[#allocation2] sm:$0x1] %v10
  $region1: #{tpu_custom_call.1} parent=0
    #allocation3 [shape = 'u8[20480]{0}', space=vmem, size = 0x5000, scoped, tag = 'input window, operand 0, single buffered']
    #allocation4 [shape = 's32[1]{0}', space=sflag, size = 0x4, scoped, tag = 'scoped memory for tpu_custom_call.1']
    #allocation5 [shape = 's32[1]{0}', space=sflag, size = 0x4, scoped, tag = 'scoped memory for tpu_custom_call.1']
    #allocation6 [shape = 'u8[98304]{0}', space=vmem, size = 0x18000, scoped, tag = 'input window, operand 1, single buffered']
    #allocation7 [shape = 's32[1]{0}', space=sflag, size = 0x4, scoped, tag = 'scoped memory for tpu_custom_call.1']
    #allocation8 [shape = 'u8[512]{0}', space=vmem, size = 0x400, scoped, tag = 'output window, operand 0, single buffered']
    %12 = vsyncpa [#allocation4], 0
    %13 = vsyncpa [#allocation7], 0
    %14 = vsyncpa [#allocation5], 0
    // Predicated region
    $region2: #{tpu_custom_call.1} parent=1 // pred_check
      _
    $region3: #{tpu_custom_call.1} parent=1 // pred_check_branch
      %16 = sbr.rel (0) target = $region5
    $region4: #{tpu_custom_call.1} parent=1 // pred_region
      %s18 = ssub.s32 640, 640
      %19 = vsyncadd [#allocation4], %s18
      %s20 = sshll.u32 [#allocation3], 4
      %s21 = int_to_ptr.vmem [resolvable:$true] %s20
      %26 = dma.hbm_to_vmem [thread:$0]  %s0, 640, %s21, [#allocation4], 128, 128, 8
    $region5: #{tpu_custom_call.1} parent=1 // pred_fallthru
      _
    // Predicated region
    $region6: #{tpu_custom_call.1} parent=1 // pred_check
      _
    $region7: #{tpu_custom_call.1} parent=1 // pred_check_branch
      %28 = sbr.rel (0) target = $region9
    $region8: #{tpu_custom_call.1} parent=1 // pred_region
      %s30 = ssub.s32 3072, 3072
      %31 = vsyncadd [#allocation7], %s30
      %s32 = sshll.u32 [#allocation6], 4
      %s33 = int_to_ptr.vmem [resolvable:$true] %s32
      %38 = dma.hbm_to_vmem [thread:$0]  %s1, 3072, %s33, [#allocation7], 256, 256, 16
    $region9: #{tpu_custom_call.1} parent=1 // pred_fallthru
      _
    // Predicated region
    $region10: #{tpu_custom_call.1} parent=1 // pred_check
      _
    $region11: #{tpu_custom_call.1} parent=1 // pred_check_branch
      %40 = sbr.rel (0) target = $region13
    $region12: #{tpu_custom_call.1} parent=1 // pred_region
      _
    $region13: #{tpu_custom_call.1} parent=1 // pred_fallthru
      _
    // Predicated region
    $region14: #{tpu_custom_call.1} parent=1 // pred_check
      _
    $region15: #{tpu_custom_call.1} parent=1 // pred_check_branch
      %42 = sbr.rel (0) target = $region17
    $region16: #{tpu_custom_call.1} parent=1 // pred_region
      _
    $region17: #{tpu_custom_call.1} parent=1 // pred_fallthru
      _
    // Predicated region
    $region18: #{tpu_custom_call.1} parent=1 // pred_check
      _
    $region19: #{tpu_custom_call.1} parent=1 // pred_check_branch
      %44 = sbr.rel (0) target = $region21
    $region20: #{tpu_custom_call.1} parent=1 // pred_region
      _
    $region21: #{tpu_custom_call.1} parent=1 // pred_fallthru
      _
    // Predicated region
    $region22: #{tpu_custom_call.1} parent=1 // pred_check
      _
    $region23: #{tpu_custom_call.1} parent=1 // pred_check_branch
      %46 = sbr.rel (0) target = $region25
    $region24: #{tpu_custom_call.1} parent=1 // pred_region
      %47 = dma.done [#allocation4], 640
    $region25: #{tpu_custom_call.1} parent=1 // pred_fallthru
      _
    // Predicated region
    $region26: #{tpu_custom_call.1} parent=1 // pred_check
      _
    $region27: #{tpu_custom_call.1} parent=1 // pred_check_branch
      %49 = sbr.rel (0) target = $region29
    $region28: #{tpu_custom_call.1} parent=1 // pred_region
      %50 = dma.done [#allocation7], 3072
    $region29: #{tpu_custom_call.1} parent=1 // pred_fallthru
      _
    %v51 = vld [vmem:[#allocation3] sm:$0xff]
    %v52 = vld [vmem:[#allocation3 + $0x8] sm:$0xff]
    %v53 = vld [vmem:[#allocation3 + $0x10] sm:$0xff]
    %v54 = vld [vmem:[#allocation3 + $0x18] sm:$0xff]
    %v55 = vld [vmem:[#allocation3 + $0x20] sm:$0xff]
    %v56 = vld [vmem:[#allocation6] sm:$0xff]
    %v57 = vld [vmem:[#allocation6 + $0x8] sm:$0xff]
    %v58 = vld [vmem:[#allocation6 + $0x10] sm:$0xff]
    %v59 = vld [vmem:[#allocation6 + $0x18] sm:$0xff]
    %v60 = vld [vmem:[#allocation6 + $0x20] sm:$0xff]
    %v61 = vld [vmem:[#allocation6 + $0x28] sm:$0xff]
    %v62 = vld [vmem:[#allocation6 + $0x30] sm:$0xff]
    %v63 = vld [vmem:[#allocation6 + $0x38] sm:$0xff]
    %v64 = vld [vmem:[#allocation6 + $0x40] sm:$0xff]
    %v65 = vld [vmem:[#allocation6 + $0x48] sm:$0xff]
    %v66 = vld [vmem:[#allocation6 + $0x50] sm:$0xff]
    %v67 = vld [vmem:[#allocation6 + $0x58] sm:$0xff]
    %v68 = vld [vmem:[#allocation6 + $0x60] sm:$0xff]
    %v69 = vld [vmem:[#allocation6 + $0x68] sm:$0xff]
    %v70 = vld [vmem:[#allocation6 + $0x70] sm:$0xff]
    %v71 = vld [vmem:[#allocation6 + $0x78] sm:$0xff]
    %v72 = vld [vmem:[#allocation6 + $0x80] sm:$0xff]
    %v73 = vld [vmem:[#allocation6 + $0x88] sm:$0xff]
    %v74 = vld [vmem:[#allocation6 + $0x90] sm:$0xff]
    %v75 = vld [vmem:[#allocation6 + $0x98] sm:$0xff]
    %v76 = vld [vmem:[#allocation6 + $0xa0] sm:$0xff]
    %v77 = vld [vmem:[#allocation6 + $0xa8] sm:$0xff]
    %v78 = vld [vmem:[#allocation6 + $0xb0] sm:$0xff]
    %v79 = vld [vmem:[#allocation6 + $0xb8] sm:$0xff]
    %v80 = vld [vmem:[%s2] sm:$0x3]
    %v82 = vlaneseq
    %v83 = vshrl.u32 %v82, 7
    %v84 = vsub.s32 0, %v83
    %v85 = vrot.slane %v80, %v84
    %v86 = vlaneseq
    %v87 = vshrl.u32 %v86, 7
    %v88 = vsub.s32 1, %v87
    %v89 = vrot.slane %v80, %v88
    %vm92 = vcmask 785408
    %v94 = vsel %vm92, %v51, 0
    %v97 = vsel %vm92, %v52, 0
    %v100 = vsel %vm92, %v53, 0
    %v103 = vsel %vm92, %v54, 0
    %v106 = vsel %vm92, %v55, 0
    %108 = vmatprep.subr.mxu0 0.0
    %109 = vmatpush1.msra.mxu0 0.0
    %110 = vmatprep.subr.mxu0 0.0
    %111 = vmatpush1.msra.mxu0 0.0
    %112 = vmatprep.subr.mxu0 0.0
    %113 = vmatpush1.msra.mxu0 0.0
    %114 = vmatprep.subr.mxu0 0.0
    %115 = vmatpush1.msra.mxu0 0.0
    %116 = vmatprep.subr.mxu0 %v79
    %117 = vmatpush1.msra.mxu0 %v78
    %118 = vmatprep.subr.mxu0 %v77
    %119 = vmatpush1.msra.mxu0 %v76
    %120 = vmatprep.subr.mxu0 %v75
    %121 = vmatpush1.msra.mxu0 %v74
    %122 = vmatprep.subr.mxu0 %v73
    %123 = vmatpush1.msra.mxu0 %v72
    %124 = vmatprep.subr.mxu0 %v71
    %125 = vmatpush1.msra.mxu0 %v70
    %126 = vmatprep.subr.mxu0 %v69
    %127 = vmatpush1.msra.mxu0 %v68
    %128 = vmatprep.subr.mxu0 %v67
    %129 = vmatpush1.msra.mxu0 %v66
    %130 = vmatprep.subr.mxu0 %v65
    %131 = vmatpush1.msra.mxu0 %v64
    %132 = vmatprep.subr.mxu0 %v63
    %133 = vmatpush1.msra.mxu0 %v62
    %134 = vmatprep.subr.mxu0 %v61
    %135 = vmatpush1.msra.mxu0 %v60
    %136 = vmatprep.subr.mxu0 %v59
    %137 = vmatpush1.msra.mxu0 %v58
    %138 = vmatprep.subr.mxu0 %v57
    %139 = vmatpush1.msra.mxu0 %v56
    %140 = vmatprep.subr.mxu0 0.0
    %141 = vmatpush2.msra.mxu0 0.0
    %142 = vmatprep.subr.mxu0 0.0
    %143 = vmatpush2.msra.mxu0 0.0
    %144 = vmatprep.subr.mxu0 0.0
    %145 = vmatpush2.msra.mxu0 0.0
    %146 = vmatprep.subr.mxu0 0.0
    %147 = vmatpush2.msra.mxu0 0.0
    %148 = vmatprep.subr.mxu0 0.0
    %149 = vmatpush2.msra.mxu0 0.0
    %150 = vmatprep.subr.mxu0 0.0
    %151 = vmatpush2.msra.mxu0 0.0
    %152 = vmatprep.subr.mxu0 0.0
    %153 = vmatpush2.msra.mxu0 0.0
    %154 = vmatprep.subr.mxu0 0.0
    %155 = vmatpush2.msra.mxu0 0.0
    %156 = vmatprep.subr.mxu0 0.0
    %157 = vmatpush2.msra.mxu0 0.0
    %158 = vmatprep.subr.mxu0 0.0
    %159 = vmatpush2.msra.mxu0 0.0
    %160 = vmatprep.subr.mxu0 0.0
    %161 = vmatpush2.msra.mxu0 0.0
    %162 = vmatprep.subr.mxu0 0.0
    %163 = vmatpush2.msra.mxu0 0.0
    %164 = vmatprep.subr.mxu0 0.0
    %165 = vmatpush2.msra.mxu0 0.0
    %166 = vmatprep.subr.mxu0 0.0
    %167 = vmatpush2.msra.mxu0 0.0
    %168 = vmatprep.subr.mxu0 0.0
    %169 = vmatpush2.msra.mxu0 0.0
    %170 = vmatprep.subr.mxu0 0.0
    %171 = vmatpush2.msra.mxu0 0.0
    %172 = vmatprep.mubr.f32.mxu0 0.0
    %173 = vmatmul.mubr.f32.gmra.mxu0 %v94
    %v174 = vpop.f32.mrf.mxu0
    %v175 = vadd.f32 %v85, %v174
    %v176 = vpop.f32.mrf.mxu0
    %v177 = vadd.f32 %v89, %v176
    %178 = vmatprep.mubr.f32.mxu0 0.0
    %179 = vmatmul.mubr.f32.gmra.mxu0 %v97
    %v180 = vpop.f32.mrf.mxu0
    %v181 = vadd.f32 %v85, %v180
    %v182 = vpop.f32.mrf.mxu0
    %v183 = vadd.f32 %v89, %v182
    %184 = vmatprep.mubr.f32.mxu0 0.0
    %185 = vmatmul.mubr.f32.gmra.mxu0 %v100
    %v186 = vpop.f32.mrf.mxu0
    %v187 = vadd.f32 %v85, %v186
    %v188 = vpop.f32.mrf.mxu0
    %v189 = vadd.f32 %v89, %v188
    %190 = vmatprep.mubr.f32.mxu0 0.0
    %191 = vmatmul.mubr.f32.gmra.mxu0 %v103
    %v192 = vpop.f32.mrf.mxu0
    %v193 = vadd.f32 %v85, %v192
    %v194 = vpop.f32.mrf.mxu0
    %v195 = vadd.f32 %v89, %v194
    %196 = vmatprep.mubr.f32.mxu0 0.0
    %197 = vmatmul.mubr.f32.gmra.mxu0 %v106
    %v198 = vpop.f32.mrf.mxu0
    %v199 = vadd.f32 %v85, %v198
    %v200 = vpop.f32.mrf.mxu0
    %v201 = vadd.f32 %v89, %v200
    %202 = vdwg.mxu0
    %v203 = vtanh.pop %v175
    %v204 = vtanh.pop %v181
    %v205 = vtanh.pop %v187
    %v206 = vtanh.pop %v193
    %v207 = vtanh.pop %v199
    %v208 = vxor.u32 %v177, 2147483648
    %v209 = vxor.u32 %v183, 2147483648
    %v210 = vxor.u32 %v189, 2147483648
    %v211 = vxor.u32 %v195, 2147483648
    %v212 = vxor.u32 %v201, 2147483648
    %v213 = vmul.f32 %v208, 1.442695
    %v214 = vpow.pop %v213
    %v215 = vmul.f32 %v209, 1.442695
    %v216 = vpow.pop %v215
    %v217 = vmul.f32 %v210, 1.442695
    %v218 = vpow.pop %v217
    %v219 = vmul.f32 %v211, 1.442695
    %v220 = vpow.pop %v219
    %v221 = vmul.f32 %v212, 1.442695
    %v222 = vpow.pop %v221
    %v223 = vadd.f32 %v214, 1.0
    %v224 = vadd.f32 %v216, 1.0
    %v225 = vadd.f32 %v218, 1.0
    %v226 = vadd.f32 %v220, 1.0
    %v227 = vadd.f32 %v222, 1.0
    %v228 = vrcp.pop %v223
    %v229 = vmul.f32 1.0, %v228
    %v230 = vrcp.pop %v224
    %v231 = vmul.f32 1.0, %v230
    %v232 = vrcp.pop %v225
    %v233 = vmul.f32 1.0, %v232
    %v234 = vrcp.pop %v226
    %v235 = vmul.f32 1.0, %v234
    %v236 = vrcp.pop %v227
    %v237 = vmul.f32 1.0, %v236
    %v238 = vmul.f32 %v203, %v229
    %v239 = vmul.f32 %v204, %v231
    %v240 = vmul.f32 %v205, %v233
    %v241 = vmul.f32 %v206, %v235
    %v242 = vmul.f32 %v207, %v237
    %v243 = vld [vmem:[%s3] sm:$0x1]
    %v244 = vld [vmem:[#allocation2] sm:$0x1]
    %246 = vset.pattern.permute.xlu0 0
    %247 = vperm.xlu0 %246, %v244
    %v248 = vpop.permute.xlu0 %247
    %v250 = vlaneseq
    %v251 = vshrl.u32 %v250, 7
    %v252 = vsub.s32 0, %v251
    %v253 = vrot.slane %v248, %v252
    %254 = vmatprep.subr.mxu0 0.0
    %255 = vmatpush1.xpose.msra.mxu0 0.0
    %256 = vmatprep.subr.mxu0 0.0
    %257 = vmatpush1.xpose.msra.mxu0 0.0
    %258 = vmatprep.subr.mxu0 0.0
    %259 = vmatpush1.xpose.msra.mxu0 0.0
    %260 = vmatprep.subr.mxu0 0.0
    %261 = vmatpush1.xpose.msra.mxu0 0.0
    %262 = vmatprep.subr.mxu0 0.0
    %263 = vmatpush1.xpose.msra.mxu0 0.0
    %264 = vmatprep.subr.mxu0 0.0
    %265 = vmatpush1.xpose.msra.mxu0 0.0
    %266 = vmatprep.subr.mxu0 0.0
    %267 = vmatpush1.xpose.msra.mxu0 0.0
    %268 = vmatprep.subr.mxu0 0.0
    %269 = vmatpush1.xpose.msra.mxu0 0.0
    %270 = vmatprep.subr.mxu0 0.0
    %271 = vmatpush1.xpose.msra.mxu0 0.0
    %272 = vmatprep.subr.mxu0 0.0
    %273 = vmatpush1.xpose.msra.mxu0 0.0
    %274 = vmatprep.subr.mxu0 0.0
    %275 = vmatpush1.xpose.msra.mxu0 0.0
    %276 = vmatprep.subr.mxu0 0.0
    %277 = vmatpush1.xpose.msra.mxu0 %v242
    %278 = vmatprep.subr.mxu0 0.0
    %279 = vmatpush1.xpose.msra.mxu0 %v241
    %280 = vmatprep.subr.mxu0 0.0
    %281 = vmatpush1.xpose.msra.mxu0 %v240
    %282 = vmatprep.subr.mxu0 0.0
    %283 = vmatpush1.xpose.msra.mxu0 %v239
    %284 = vmatprep.subr.mxu0 0.0
    %285 = vmatpush1.xpose.msra.mxu0 %v238
    %286 = vmatprep.subr.mxu0 0.0
    %287 = vmatpush2.xpose.msra.mxu0 0.0
    %288 = vmatprep.subr.mxu0 0.0
    %289 = vmatpush2.xpose.msra.mxu0 0.0
    %290 = vmatprep.subr.mxu0 0.0
    %291 = vmatpush2.xpose.msra.mxu0 0.0
    %292 = vmatprep.subr.mxu0 0.0
    %293 = vmatpush2.xpose.msra.mxu0 0.0
    %294 = vmatprep.subr.mxu0 0.0
    %295 = vmatpush2.xpose.msra.mxu0 0.0
    %296 = vmatprep.subr.mxu0 0.0
    %297 = vmatpush2.xpose.msra.mxu0 0.0
    %298 = vmatprep.subr.mxu0 0.0
    %299 = vmatpush2.xpose.msra.mxu0 0.0
    %300 = vmatprep.subr.mxu0 0.0
    %301 = vmatpush2.xpose.msra.mxu0 0.0
    %302 = vmatprep.subr.mxu0 0.0
    %303 = vmatpush2.xpose.msra.mxu0 0.0
    %304 = vmatprep.subr.mxu0 0.0
    %305 = vmatpush2.xpose.msra.mxu0 0.0
    %306 = vmatprep.subr.mxu0 0.0
    %307 = vmatpush2.xpose.msra.mxu0 0.0
    %308 = vmatprep.subr.mxu0 0.0
    %309 = vmatpush2.xpose.msra.mxu0 0.0
    %310 = vmatprep.subr.mxu0 0.0
    %311 = vmatpush2.xpose.msra.mxu0 0.0
    %312 = vmatprep.subr.mxu0 0.0
    %313 = vmatpush2.xpose.msra.mxu0 0.0
    %314 = vmatprep.subr.mxu0 0.0
    %315 = vmatpush2.xpose.msra.mxu0 0.0
    %316 = vmatprep.subr.mxu0 0.0
    %317 = vmatpush2.xpose.msra.mxu0 0.0
    %318 = vmatprep.mubr.f32.mxu0 0.0
    %319 = vmatmul.mubr.f32.gmra.mxu0 %v243
    %v320 = vpop.f32.mrf.mxu0
    %v321 = vadd.f32 %v253, %v320
    %v322 = vpop.f32.mrf.mxu0
    %323 = vdwg.mxu0
    %vm324 = vcmask 319488
    %325 = vst.msk [vmem:[#allocation8] sm:$0x1] %vm324, %v321
    // Predicated region
    $region30: #{tpu_custom_call.1} parent=1 // pred_check
      _
    $region31: #{tpu_custom_call.1} parent=1 // pred_check_branch
      %327 = sbr.rel (0) target = $region33
    $region32: #{tpu_custom_call.1} parent=1 // pred_region
      %s329 = ssub.s32 16, 16
      %330 = vsyncadd [#allocation5], %s329
      %s332 = sshll.u32 [#allocation8], 4
      %s333 = int_to_ptr.vmem [resolvable:$true] %s332
      %335 = dma.vmem_to_hbm [thread:$0]  %s333, 16, %s5, [#allocation5]
    $region33: #{tpu_custom_call.1} parent=1 // pred_fallthru
      _
    // Predicated region
    $region34: #{tpu_custom_call.1} parent=1 // pred_check
      _
    $region35: #{tpu_custom_call.1} parent=1 // pred_check_branch
      %337 = sbr.rel (0) target = $region37
    $region36: #{tpu_custom_call.1} parent=1 // pred_region
      %338 = dma.done [#allocation5], 16
    $region37: #{tpu_custom_call.1} parent=1 // pred_fallthru
      _
    %339 = vsyncpa [#allocation4], 1
    %340 = vsyncpa [#allocation7], 1
    %341 = vsyncpa [#allocation5], 1

</llo_original>
